<compile_context>
chip_gen: v5e
topology: v5e:2x2
jax: 0.10.0
libtpu: 0.0.40
codegen_flags: <defaults>
</compile_context>

<pallas_src>
import jax
import jax.numpy as jnp
from jax.experimental import pallas as pl
from jax.experimental.pallas import tpu as pltpu

HIDDEN = 100   # logical hidden width of nn.Linear(input_dim, 100)
H_PAD = 128    # padded to one full lane width -> fully populated vregs
OUT = 1


def mlp_kernel(x_ref, w1_ref, aux_ref, b2_ref, o_ref):
    """One batch tile, natural layout.

    x   : (TB, D)      streamed input tile (f32 or bf16)
    w1  : (D, H_PAD)   first-layer weight, zero-padded columns, pinned
    aux : (2, H_PAD)   row 0 = b1 (padded with 0), row 1 = w2^T (padded with 0)
    b2  : (1, 1)       second-layer bias scalar (SMEM)
    o   : (TB, 1)      per-row scalar outputs for this tile
    """
    # Layer 1 on the MXU, f32 accumulation regardless of streaming dtype.
    h = jnp.dot(x_ref[...], w1_ref[...], preferred_element_type=jnp.float32)
    h = jnp.maximum(h + aux_ref[0:1, :], 0.0)          # bias + ReLU on the VPU
    # Layer 2 has output width 1: VPU multiply + lane reduce (XLU) instead of
    # a degenerate (H, 1) matmul.  Result is (TB, 1), matching the out block.
    y = jnp.sum(h * aux_ref[1:2, :], axis=-1, keepdims=True) + b2_ref[0, 0]
    o_ref[...] = y.astype(o_ref.dtype)


def _vmem_bytes(tb, d, itemsize):
    """Rough VMEM footprint of one pipelined step (lane/sublane padded)."""
    d_lanes = ((d + 127) // 128) * 128
    d_sub = ((d + 7) // 8) * 8
    return (2 * tb * d_lanes * itemsize      # double-buffered x tiles
            + 2 * d_sub * H_PAD * itemsize   # pinned w1 (two pipeline buffers)
            + 2 * 8 * H_PAD * 4              # pinned (b1 ; w2^T) block
            + tb * H_PAD * 4                 # f32 hidden activations
            + 2 * tb * 128 * 4)              # (TB, 1) out block rounds to lane tile


def _choose_batch_tile(d, itemsize, budget=36 * 1024 * 1024):
    """Largest power-of-two batch tile (<= 4096) whose footprint fits budget."""
    tb = 4096
    while tb > 128 and _vmem_bytes(tb, d, itemsize) > budget:
        tb //= 2
    return tb


def mymodel_forward(x, w1, b1, w2, b2):
    """x: (B, D) f32 or bf16; w1: (D, HIDDEN); b1: (1, HIDDEN) or (HIDDEN,);
    w2: (HIDDEN, 1) or (HIDDEN,); b2: (1, 1) or (1,).
    Returns (B,) f32, matching net(x).squeeze(1)."""
    B, D = x.shape
    H = w1.shape[1]
    assert H == HIDDEN
    hp = H_PAD - H

    # Stream activations in the caller's dtype (bf16 halves HBM traffic).
    if x.dtype == jnp.bfloat16:
        compute_dtype = jnp.bfloat16
    else:
        compute_dtype = jnp.float32
        if x.dtype != jnp.float32:
            x = x.astype(jnp.float32)
    itemsize = jnp.dtype(compute_dtype).itemsize

    # Tiny, one-time weight prep (D*H elements): pad hidden 100 -> 128.
    w1_p = jnp.pad(w1, ((0, 0), (0, hp))).astype(compute_dtype)          # (D, H_PAD)
    b1_row = jnp.pad(b1.reshape(1, H), ((0, 0), (0, hp)))                # (1, H_PAD)
    w2_row = jnp.pad(w2.reshape(1, H), ((0, 0), (0, hp)))                # (1, H_PAD)
    aux = jnp.concatenate([b1_row, w2_row], axis=0).astype(jnp.float32)  # (2, H_PAD)
    b2_s = b2.reshape(1, 1).astype(jnp.float32)                          # (1, 1) SMEM

    # Batch tiling: big tiles to amortize per-step overhead; >=2 tiles for
    # mid-size batches so both v7x TensorCores are used.  No input padding:
    # a ragged last tile is masked by Pallas at the block edge.
    TB_max = _choose_batch_tile(D, itemsize)
    if B <= 16:
        TB = B                                    # single full-extent block
    else:
        TB = min(TB_max, ((-(-B // 2) + 7) // 8) * 8)
    num_tiles = pl.cdiv(B, TB)

    vmem_limit = int(min(max(2 * _vmem_bytes(TB, D, itemsize), 32 * 1024 * 1024),
                         48 * 1024 * 1024))       # never claim all of v7x's 64 MiB

    out = pl.pallas_call(
        mlp_kernel,
        out_shape=jax.ShapeDtypeStruct((B, 1), jnp.float32),
        grid=(num_tiles,),
        in_specs=[
            pl.BlockSpec((TB, D), lambda i: (i, 0)),            # streamed x tiles
            pl.BlockSpec((D, H_PAD), lambda i: (0, 0)),         # pinned weight
            pl.BlockSpec((2, H_PAD), lambda i: (0, 0)),         # pinned (b1; w2^T)
            pl.BlockSpec(memory_space=pltpu.MemorySpace.SMEM),  # scalar bias b2
        ],
        out_specs=pl.BlockSpec((TB, 1), lambda i: (i, 0)),
        compiler_params=pltpu.CompilerParams(
            dimension_semantics=("parallel",),
            vmem_limit_bytes=vmem_limit,
        ),
    )(x, w1_p, aux, b2_s)

    return out[:, 0]                              # same as .squeeze(1)


def init_params(key, input_dim):
    # Deterministic synthetic init (uniform ~ PyTorch default fan-in bound).
    k1, k2, k3, k4 = jax.random.split(key, 4)
    bound1 = 1.0 / jnp.sqrt(input_dim)
    bound2 = 1.0 / jnp.sqrt(HIDDEN)
    w1 = jax.random.uniform(k1, (input_dim, HIDDEN), jnp.float32, -bound1, bound1)
    b1 = jax.random.uniform(k2, (1, HIDDEN), jnp.float32, -bound1, bound1)
    w2 = jax.random.uniform(k3, (HIDDEN, OUT), jnp.float32, -bound2, bound2)
    b2 = jax.random.uniform(k4, (1, OUT), jnp.float32, -bound2, bound2)
    return w1, b1, w2, b2


def _reference(x, w1, b1, w2, b2):
    h = jnp.maximum(x @ w1 + b1.reshape(1, -1), 0.0)
    return (h @ w2.reshape(-1, 1) + b2.reshape(1, -1))[:, 0]


if __name__ == "__main__":
    key = jax.random.PRNGKey(0)
    kx, kx2, kp = jax.random.split(key, 3)

    D = 32
    w1, b1, w2, b2 = init_params(kp, D)

    # Tiny batch: single full-extent block, no edge masking.
    B = 8
    x = jax.random.normal(kx, (B, D), jnp.float32)
    pred = mymodel_forward(x, w1, b1, w2, b2)
    jax.block_until_ready(pred)
    ref = _reference(x, w1, b1, w2, b2)
    assert pred.shape == (B,)
    assert jnp.allclose(pred, ref, atol=5e-4, rtol=1e-4)

    # Mid-size batch: two "parallel" tiles (both v7x cores busy) with a ragged
    # last tile handled by Pallas edge masking -- no host-side pad/transpose.
    B2 = 600
    x2 = jax.random.normal(kx2, (B2, D), jnp.float32)
    pred2 = mymodel_forward(x2, w1, b1, w2, b2)
    jax.block_until_ready(pred2)
    ref2 = _reference(x2, w1, b1, w2, b2)
    assert pred2.shape == (B2,)
    assert jnp.allclose(pred2, ref2, atol=5e-4, rtol=1e-4)

    # bf16 activation streaming path (half HBM traffic, f32 accumulation).
    xb = x2.astype(jnp.bfloat16)
    pred3 = mymodel_forward(xb, w1, b1, w2, b2)
    jax.block_until_ready(pred3)
    ref3 = _reference(xb.astype(jnp.float32),
                      w1.astype(jnp.bfloat16).astype(jnp.float32), b1, w2, b2)
    assert pred3.shape == (B2,)
    assert jnp.allclose(pred3, ref3, atol=5e-3, rtol=5e-3)

    print("KERNEL_OK")
</pallas_src>

<mosaic_0001>
module attributes {stable_mosaic.version = 11 : i64} {
  func.func @mlp_kernel(%arg0: i32, %arg1: memref<8x32xf32, #tpu.memory_space<vmem>>, %arg2: memref<32x128xf32, #tpu.memory_space<vmem>>, %arg3: memref<2x128xf32, #tpu.memory_space<vmem>>, %arg4: memref<1x1xf32, #tpu.memory_space<smem>>, %arg5: memref<8x1xf32, #tpu.memory_space<vmem>>) attributes {dimension_semantics = [#tpu.dimension_semantics<parallel>], iteration_bounds = array<i64: 1>, scalar_prefetch = 0 : i64, scratch_operands = 0 : i64, tpu.core_type = #tpu.core_type<tc>, window_params = [{transform_indices = @transform_0, window_bounds = array<i64: 8, 32>}, {pipeline_mode = #tpu.pipeline_mode<synchronous>, transform_indices = @transform_1, window_bounds = array<i64: 32, 128>}, {pipeline_mode = #tpu.pipeline_mode<synchronous>, transform_indices = @transform_2, window_bounds = array<i64: 2, 128>}, {transform_indices = @transform_3, window_bounds = array<i64: 1, 1>}, {transform_indices = @transform_4, window_bounds = array<i64: 8, 1>}]} {
    %c0 = arith.constant 0 : index
    %c0_0 = arith.constant 0 : index
    %0 = vector.load %arg1[%c0, %c0_0] : memref<8x32xf32, #tpu.memory_space<vmem>>, vector<8x32xf32>
    %c0_1 = arith.constant 0 : index
    %c0_2 = arith.constant 0 : index
    %1 = vector.load %arg2[%c0_1, %c0_2] : memref<32x128xf32, #tpu.memory_space<vmem>>, vector<32x128xf32>
    %cst = arith.constant dense<0.000000e+00> : vector<8x128xf32>
    %2 = tpu.matmul %0, %1, %cst {dimension_numbers = #tpu.dot_dimension_numbers<[1], [0], [0], [1], [0, 0, 1, 1], [], []>} : vector<8x32xf32>, vector<32x128xf32>, vector<8x128xf32> -> vector<8x128xf32>
    %c0_3 = arith.constant 0 : index
    %c0_4 = arith.constant 0 : index
    %3 = vector.load %arg3[%c0_3, %c0_4] : memref<2x128xf32, #tpu.memory_space<vmem>>, vector<1x128xf32>
    %4 = vector.broadcast %3 : vector<1x128xf32> to vector<8x128xf32>
    %5 = arith.addf %2, %4 : vector<8x128xf32>
    %cst_5 = arith.constant 0.000000e+00 : f32
    %6 = vector.broadcast %cst_5 : f32 to vector<8x128xf32>
    %7 = arith.maximumf %5, %6 : vector<8x128xf32>
    %c1 = arith.constant 1 : index
    %c0_6 = arith.constant 0 : index
    %8 = vector.load %arg3[%c1, %c0_6] : memref<2x128xf32, #tpu.memory_space<vmem>>, vector<1x128xf32>
    %9 = vector.broadcast %8 : vector<1x128xf32> to vector<8x128xf32>
    %10 = arith.mulf %7, %9 : vector<8x128xf32>
    %cst_7 = arith.constant dense<0.000000e+00> : vector<8xf32>
    %11 = vector.multi_reduction <add>, %10, %cst_7 [1] : vector<8x128xf32> to vector<8xf32>
    %12 = vector.shape_cast %11 : vector<8xf32> to vector<8x1xf32>
    %c0_8 = arith.constant 0 : index
    %c0_9 = arith.constant 0 : index
    %13 = memref.load %arg4[%c0_8, %c0_9] : memref<1x1xf32, #tpu.memory_space<smem>>
    %14 = vector.broadcast %13 : f32 to vector<8x1xf32>
    %15 = arith.addf %12, %14 : vector<8x1xf32>
    %c0_10 = arith.constant 0 : index
    %c0_11 = arith.constant 0 : index
    %16 = vector.load %arg5[%c0_10, %c0_11] : memref<8x1xf32, #tpu.memory_space<vmem>>, vector<8x1xf32>
    tpu.vector_store %arg5[%c0_10, %c0_11], %15 {strides = array<i32>} : memref<8x1xf32, #tpu.memory_space<vmem>>, vector<8x1xf32>,
    return
  }
  func.func @transform_0(%arg0: i32) -> (i32, i32) {
    %c0_i32 = arith.constant 0 : i32
    %c0_i32_0 = arith.constant 0 : i32
    return %arg0, %c0_i32 : i32, i32
  }
  func.func @transform_1(%arg0: i32) -> (i32, i32) {
    %c0_i32 = arith.constant 0 : i32
    %c0_i32_0 = arith.constant 0 : i32
    %c0_i32_1 = arith.constant 0 : i32
    return %c0_i32, %c0_i32_0 : i32, i32
  }
  func.func @transform_2(%arg0: i32) -> (i32, i32) {
    %c0_i32 = arith.constant 0 : i32
    %c0_i32_0 = arith.constant 0 : i32
    %c0_i32_1 = arith.constant 0 : i32
    return %c0_i32, %c0_i32_0 : i32, i32
  }
  func.func @transform_3(%arg0: i32) -> (i32, i32) {
    %c0_i32 = arith.constant 0 : i32
    %c0_i32_0 = arith.constant 0 : i32
    %c0_i32_1 = arith.constant 0 : i32
    return %c0_i32, %c0_i32_0 : i32, i32
  }
  func.func @transform_4(%arg0: i32) -> (i32, i32) {
    %c0_i32 = arith.constant 0 : i32
    %c0_i32_0 = arith.constant 0 : i32
    return %arg0, %c0_i32 : i32, i32
  }
}

</mosaic_0001>

<llo_original>
// kernel: tpu_custom_call.1
$region0: #{tpu_custom_call.1}
  #allocation0 [shape = 'u32[]', space=smem, size = 0x4, offset = 0x4, fixed_abs, tag = 'smem constant byte address 0x4 - core index']
  #allocation1 [shape = 'u32[72,128]{1,0:T(1,128)}', space=vmem, size = 0x9000, scoped, tag = 'internal scratch']
  #allocation2 [shape = 'f32[1,1]{1,0:T(1,128)S(6)}', space=smem, size = 0x200, scoped, tag = 'scoped memory for tpu_custom_call.1']
  %s0 = inlined_call_operand.hbm [shape: f32[8,32], index: 0, kind: input, shape index: {}]
  %s1 = inlined_call_operand.hbm [shape: f32[32,128], index: 1, kind: input, shape index: {}]
  %s2 = inlined_call_operand.vmem [shape: f32[2,128], index: 2, kind: input, shape index: {}]
  %s3 = inlined_call_operand.<no memory space> [shape: f32[1,1], index: 3, kind: input, shape index: {}]
  %s4 = inlined_call_operand.vmem [shape: f32[8,1], index: 4, kind: output, shape index: {}]
  %s5 = sld [smem:[#allocation0]]
  $region34: #{tpu_custom_call.1} parent=0
    _
  %s7 = ssub.s32 1, %s5
  %s8 = scalar_select 0, %s7, %s5
  %9 = sst [smem:[#allocation2]] %s3
  $region1: #{tpu_custom_call.1} parent=0
    #allocation3 [shape = 'u8[4096]{0}', space=vmem, size = 0x1000, scoped, tag = 'input window, operand 0, single buffered']
    #allocation4 [shape = 's32[1]{0}', space=sflag, size = 0x4, scoped, tag = 'scoped memory for tpu_custom_call.1']
    #allocation5 [shape = 'u8[16384]{0}', space=vmem, size = 0x4000, scoped, tag = 'input window, operand 1, single buffered']
    #allocation6 [shape = 's32[1]{0}', space=sflag, size = 0x4, scoped, tag = 'scoped memory for tpu_custom_call.1']
    %10 = vsyncpa [#allocation4], 0
    %11 = vsyncpa [#allocation6], 0
    // Predicated region
    $region2: #{tpu_custom_call.1} parent=1 // pred_check
      _
    $region3: #{tpu_custom_call.1} parent=1 // pred_check_branch
      %13 = sbr.rel (0) target = $region5
    $region4: #{tpu_custom_call.1} parent=1 // pred_region
      %15 = vsyncadd [#allocation4], 0
      %s17 = sshll.u32 %s0, 4
      %s18 = int_to_ptr.hbm [resolvable:$true] %s17
      %s19 = sshll.u32 [#allocation3], 4
      %s20 = int_to_ptr.vmem [resolvable:$true] %s19
      %22 = dma.hbm_to_vmem [thread:$0]  %s18, 128, %s20, [#allocation4]
    $region5: #{tpu_custom_call.1} parent=1 // pred_fallthru
      _
    // Predicated region
    $region6: #{tpu_custom_call.1} parent=1 // pred_check
      _
    $region7: #{tpu_custom_call.1} parent=1 // pred_check_branch
      %24 = sbr.rel (0) target = $region9
    $region8: #{tpu_custom_call.1} parent=1 // pred_region
      %26 = vsyncadd [#allocation6], 0
      %s27 = sshll.u32 %s1, 4
      %s28 = int_to_ptr.hbm [resolvable:$true] %s27
      %s29 = sshll.u32 [#allocation5], 4
      %s30 = int_to_ptr.vmem [resolvable:$true] %s29
      %35 = dma.hbm_to_vmem [thread:$0]  %s28, 512, %s30, [#allocation6], 128, 128, 8
    $region9: #{tpu_custom_call.1} parent=1 // pred_fallthru
      _
    // Predicated region
    $region10: #{tpu_custom_call.1} parent=1 // pred_check
      _
    $region11: #{tpu_custom_call.1} parent=1 // pred_check_branch
      %37 = sbr.rel (0) target = $region13
    $region12: #{tpu_custom_call.1} parent=1 // pred_region
      _
    $region13: #{tpu_custom_call.1} parent=1 // pred_fallthru
      _
    // Predicated region
    $region14: #{tpu_custom_call.1} parent=1 // pred_check
      _
    $region15: #{tpu_custom_call.1} parent=1 // pred_check_branch
      %39 = sbr.rel (0) target = $region17
    $region16: #{tpu_custom_call.1} parent=1 // pred_region
      _
    $region17: #{tpu_custom_call.1} parent=1 // pred_fallthru
      _
    // Predicated region
    $region18: #{tpu_custom_call.1} parent=1 // pred_check
      _
    $region19: #{tpu_custom_call.1} parent=1 // pred_check_branch
      %41 = sbr.rel (0) target = $region21
    $region20: #{tpu_custom_call.1} parent=1 // pred_region
      %43 = dma.done [#allocation4], 128
    $region21: #{tpu_custom_call.1} parent=1 // pred_fallthru
      _
    // Predicated region
    $region22: #{tpu_custom_call.1} parent=1 // pred_check
      _
    $region23: #{tpu_custom_call.1} parent=1 // pred_check_branch
      %45 = sbr.rel (0) target = $region25
    $region24: #{tpu_custom_call.1} parent=1 // pred_region
      %47 = dma.done [#allocation6], 512
    $region25: #{tpu_custom_call.1} parent=1 // pred_fallthru
      _
    %v48 = vld [vmem:[#allocation3] sm:$0xff]
    %v49 = vld [vmem:[#allocation5] sm:$0xff]
    %v50 = vld [vmem:[#allocation5 + $0x8] sm:$0xff]
    %v51 = vld [vmem:[#allocation5 + $0x10] sm:$0xff]
    %v52 = vld [vmem:[#allocation5 + $0x18] sm:$0xff]
    %v53 = vld [vmem:[%s2] sm:$0x1]
    %v54 = vperm.slane %v53, 0
    %vm55 = vcmask 261120
    %v57 = vsel %vm55, %v48, 0
    %59 = vmatpush.msra.mxu0 0.0
    %60 = vmatpush.msra.mxu0 0.0
    %61 = vmatpush.msra.mxu0 0.0
    %62 = vmatpush.msra.mxu0 0.0
    %63 = vmatpush.msra.mxu0 0.0
    %64 = vmatpush.msra.mxu0 0.0
    %65 = vmatpush.msra.mxu0 0.0
    %66 = vmatpush.msra.mxu0 0.0
    %67 = vmatpush.msra.mxu0 0.0
    %68 = vmatpush.msra.mxu0 0.0
    %69 = vmatpush.msra.mxu0 0.0
    %70 = vmatpush.msra.mxu0 0.0
    %71 = vmatpush.msra.mxu0 %v52
    %72 = vmatpush.msra.mxu0 %v51
    %73 = vmatpush.msra.mxu0 %v50
    %74 = vmatpush.msra.mxu0 %v49
    %75 = vmatmul.f32.gmra.mxu0 %v57
    %v76 = vpop.f32.mrf.mxu0
    %v77 = vadd.f32 %v54, %v76
    %78 = vdwg.mxu0
    %v79 = vmax.f32 %v77, 0.0
    %v80 = vld [vmem:[%s2 + $0x1] sm:$0x1]
    %v81 = vperm.slane %v80, 0
    %v82 = vmul.f32 %v79, %v81
    %83 = vadd.xlane.f32.xlu0 %v82
    %v84 = vpop.xlane.xlu0 %83
    %s85 = sld [smem:[#allocation2]]
    %v86 = vstv %s85
    %v87 = vadd.f32 %v84, %v86
    %vm88 = vcmask 7168
    %89 = vst.msk [vmem:[%s4] sm:$0xff] %vm88, %v87
    // Predicated region
    $region26: #{tpu_custom_call.1} parent=1 // pred_check
      _
    $region27: #{tpu_custom_call.1} parent=1 // pred_check_branch
      %91 = sbr.rel (0) target = $region29
    $region28: #{tpu_custom_call.1} parent=1 // pred_region
      _
    $region29: #{tpu_custom_call.1} parent=1 // pred_fallthru
      _
    // Predicated region
    $region30: #{tpu_custom_call.1} parent=1 // pred_check
      _
    $region31: #{tpu_custom_call.1} parent=1 // pred_check_branch
      %93 = sbr.rel (0) target = $region33
    $region32: #{tpu_custom_call.1} parent=1 // pred_region
      _
    $region33: #{tpu_custom_call.1} parent=1 // pred_fallthru
      _
    %94 = vsyncpa [#allocation4], 1
    %95 = vsyncpa [#allocation6], 1

</llo_original>
